<compile_context>
chip_gen: v6e
topology: v6e:2x2x1
jax: 0.10.0
libtpu: 0.0.40
codegen_flags: <defaults>
</compile_context>

<pallas_src>
import functools

import jax
import jax.numpy as jnp
from jax import lax
from jax.experimental import pallas as pl
from jax.experimental.pallas import tpu as pltpu


KSIZE = 7     # temporal kernel height of the (7, 1) conv
BN_EPS = 1e-5


def _temporal_block_kernel(lhs_ref, w_ref, gamma_ref, beta_ref, o_ref):
    """Single program: conv (im2col matmul) + per-slice BN + ReLU.

    lhs_ref:   (3, 7*Cin, M)   VMEM, M = N*Hout, lane-dense in M
    w_ref:     (Cout, 7*Cin)   VMEM, shared across the 3 slices
    gamma_ref: (3, Cout, 1)    VMEM (per-slice BN scale)
    beta_ref:  (3, Cout, 1)    VMEM (per-slice BN shift)
    o_ref:     (3, Cout, M)    VMEM, lane-dense in M
    """
    m = lhs_ref.shape[2]
    inv_m = 1.0 / float(m)

    w_mat = w_ref[...]                                    # load weight once

    # Static 3-way unroll over the coordinate slices (f, x, y); the conv
    # weight is shared, only the BN affine parameters differ.
    for wi in range(3):
        # ---- Conv2d (7,1): one matmul batched over all N samples ----
        conv = jnp.dot(w_mat, lhs_ref[wi],
                       preferred_element_type=jnp.float32)      # (Cout, M) f32

        # ---- BatchNorm1d, training-mode batch stats over (N, Hout) ----
        mean = jnp.sum(conv, axis=1, keepdims=True) * inv_m     # (Cout, 1)
        centered = conv - mean
        var = jnp.sum(centered * centered, axis=1, keepdims=True) * inv_m
        scale = lax.rsqrt(var + BN_EPS) * gamma_ref[wi]          # (Cout, 1)

        # ---- normalize + affine + ReLU, lane-dense store ----
        y = centered * scale + beta_ref[wi]
        o_ref[wi] = jnp.maximum(y, 0.0).astype(o_ref.dtype)


@functools.partial(jax.jit, static_argnames=("compute_dtype",))
def temporal_block_forward(x_nchw, conv_weight, gammas, betas, *,
                           compute_dtype=jnp.float32):
    """x_nchw: (N, Cin, H, 3); conv_weight: (Cout, Cin, 7, 1) (PyTorch layout);
    gammas/betas: (3, Cout).  Returns (N, Cout, H-6, 3) in float32."""
    n, c_in, h, w = x_nchw.shape
    c_out = conv_weight.shape[0]
    assert w == 3, "TemporalBlock.bn expects the last (W) axis to be 3 (f, x, y)"
    assert h >= KSIZE
    h_out = h - KSIZE + 1
    m = n * h_out
    kc = KSIZE * c_in

    # im2col LHS: lhs[w, k*Cin + c, n*Hout + h] = x[n, c, h + k, w]
    x_t = jnp.transpose(x_nchw, (3, 1, 0, 2))                    # (3, Cin, N, H)
    taps = jnp.stack([x_t[:, :, :, k:k + h_out] for k in range(KSIZE)],
                     axis=1)                                     # (3, 7, Cin, N, Hout)
    lhs = taps.reshape(3, kc, m).astype(compute_dtype)

    # PyTorch weight (Cout, Cin, 7, 1) -> (Cout, 7*Cin) with index k*Cin + c
    w2 = jnp.transpose(conv_weight[:, :, :, 0], (0, 2, 1)) \
            .reshape(c_out, kc).astype(compute_dtype)

    g_t = gammas.astype(jnp.float32).reshape(3, c_out, 1)
    b_t = betas.astype(jnp.float32).reshape(3, c_out, 1)

    # Scoped-VMEM budget: inputs + outputs are double-buffered by the pipeline.
    item = jnp.dtype(compute_dtype).itemsize
    in_bytes = 3 * kc * m * item + c_out * kc * item + 2 * (3 * c_out * 4)
    out_bytes = 3 * c_out * m * 4
    vmem_limit = int(min(2 * (in_bytes + out_bytes) + (8 << 20), 100 << 20))

    out = pl.pallas_call(
        _temporal_block_kernel,
        out_shape=jax.ShapeDtypeStruct((3, c_out, m), jnp.float32),
        grid=(1,),   # W folded into the kernel; single program, whole-slab resident
        in_specs=[
            pl.BlockSpec((3, kc, m), lambda i: (0, 0, 0)),
            pl.BlockSpec((c_out, kc), lambda i: (0, 0)),
            pl.BlockSpec((3, c_out, 1), lambda i: (0, 0, 0)),
            pl.BlockSpec((3, c_out, 1), lambda i: (0, 0, 0)),
        ],
        out_specs=pl.BlockSpec((3, c_out, m), lambda i: (0, 0, 0)),
        compiler_params=pltpu.CompilerParams(
            dimension_semantics=("arbitrary",),
            vmem_limit_bytes=vmem_limit),
    )(lhs, w2, g_t, b_t)

    # (3, Cout, N*Hout) -> NCHW (N, Cout, Hout, 3)
    return jnp.transpose(out.reshape(3, c_out, n, h_out), (2, 1, 3, 0))


def _reference_forward(x, conv_w, gammas, betas):
    """Pure-JAX reference mirroring the PyTorch module (training-mode BN)."""
    n, c_in, h, w = x.shape
    h_out = h - KSIZE + 1
    patches = jnp.stack([x[:, :, k:k + h_out, :] for k in range(KSIZE)], axis=2)
    conv = jnp.einsum("nckhw,ock->nohw", patches, conv_w[:, :, :, 0],
                      precision=lax.Precision.HIGHEST)
    outs = []
    for wi in range(3):
        s = conv[:, :, :, wi]                                    # (N, Cout, Hout)
        mean = s.mean(axis=(0, 2), keepdims=True)
        var = ((s - mean) ** 2).mean(axis=(0, 2), keepdims=True)
        y = (s - mean) * lax.rsqrt(var + BN_EPS)
        y = y * gammas[wi][None, :, None] + betas[wi][None, :, None]
        outs.append(y)
    return jnp.maximum(jnp.stack(outs, axis=-1), 0.0)


if __name__ == "__main__":
    # Small shapes: batch=2, cin=4, cout=8, temporal H=16, W=3 (f, x, y)
    N, CIN, COUT, H, W = 2, 4, 8, 16, 3

    key = jax.random.PRNGKey(0)
    kx, kw, kg, kb = jax.random.split(key, 4)

    x = jax.random.normal(kx, (N, CIN, H, W), jnp.float32)
    # Deterministic synthetic parameters (shapes from nn.Conv2d / nn.BatchNorm1d)
    conv_weight = 0.1 * jax.random.normal(kw, (COUT, CIN, KSIZE, 1), jnp.float32)
    gammas = 1.0 + 0.1 * jax.random.normal(kg, (3, COUT), jnp.float32)  # bnf/bnx/bny weight
    betas = 0.1 * jax.random.normal(kb, (3, COUT), jnp.float32)         # bnf/bnx/bny bias
    # NOTE: BatchNorm running-stat (momentum) updates have no effect on the
    # forward output, so they are intentionally not modeled.

    out = temporal_block_forward(x, conv_weight, gammas, betas)
    out = jax.block_until_ready(out)

    ref = _reference_forward(x, conv_weight, gammas, betas)
    assert out.shape == (N, COUT, H - KSIZE + 1, W), out.shape
    max_err = float(jnp.max(jnp.abs(out - ref)))
    assert max_err < 1e-2, f"mismatch vs reference: {max_err}"

    print("KERNEL_OK")
</pallas_src>

<mosaic_0001>
module attributes {stable_mosaic.version = 11 : i64} {
  func.func @_temporal_block_kernel(%arg0: i32, %arg1: memref<3x28x20xf32, #tpu.memory_space<vmem>>, %arg2: memref<8x28xf32, #tpu.memory_space<vmem>>, %arg3: memref<3x8x1xf32, #tpu.memory_space<vmem>>, %arg4: memref<3x8x1xf32, #tpu.memory_space<vmem>>, %arg5: memref<3x8x20xf32, #tpu.memory_space<vmem>>) attributes {dimension_semantics = [#tpu.dimension_semantics<arbitrary>], iteration_bounds = array<i64: 1>, scalar_prefetch = 0 : i64, scratch_operands = 0 : i64, tpu.core_type = #tpu.core_type<tc>, window_params = [{pipeline_mode = #tpu.pipeline_mode<synchronous>, transform_indices = @transform_0, window_bounds = array<i64: 3, 28, 20>}, {pipeline_mode = #tpu.pipeline_mode<synchronous>, transform_indices = @transform_1, window_bounds = array<i64: 8, 28>}, {pipeline_mode = #tpu.pipeline_mode<synchronous>, transform_indices = @transform_2, window_bounds = array<i64: 3, 8, 1>}, {pipeline_mode = #tpu.pipeline_mode<synchronous>, transform_indices = @transform_3, window_bounds = array<i64: 3, 8, 1>}, {pipeline_mode = #tpu.pipeline_mode<synchronous>, transform_indices = @transform_4, window_bounds = array<i64: 3, 8, 20>}]} {
    %c0 = arith.constant 0 : index
    %c0_0 = arith.constant 0 : index
    %0 = vector.load %arg2[%c0, %c0_0] : memref<8x28xf32, #tpu.memory_space<vmem>>, vector<8x28xf32>
    %c0_1 = arith.constant 0 : index
    %c0_2 = arith.constant 0 : index
    %c0_3 = arith.constant 0 : index
    %1 = vector.load %arg1[%c0_1, %c0_2, %c0_3] : memref<3x28x20xf32, #tpu.memory_space<vmem>>, vector<1x28x20xf32>
    %2 = vector.shape_cast %1 : vector<1x28x20xf32> to vector<28x20xf32>
    %cst = arith.constant dense<0.000000e+00> : vector<8x20xf32>
    %3 = tpu.matmul %0, %2, %cst {dimension_numbers = #tpu.dot_dimension_numbers<[1], [0], [0], [1], [0, 0, 1, 1], [], []>} : vector<8x28xf32>, vector<28x20xf32>, vector<8x20xf32> -> vector<8x20xf32>
    %cst_4 = arith.constant dense<0.000000e+00> : vector<8xf32>
    %4 = vector.multi_reduction <add>, %3, %cst_4 [1] : vector<8x20xf32> to vector<8xf32>
    %5 = vector.shape_cast %4 : vector<8xf32> to vector<8x1xf32>
    %cst_5 = arith.constant 5.000000e-02 : f32
    %6 = vector.broadcast %cst_5 : f32 to vector<8x1xf32>
    %7 = arith.mulf %5, %6 : vector<8x1xf32>
    %8 = vector.broadcast %7 : vector<8x1xf32> to vector<8x20xf32>
    %9 = arith.subf %3, %8 : vector<8x20xf32>
    %10 = arith.mulf %9, %9 : vector<8x20xf32>
    %cst_6 = arith.constant dense<0.000000e+00> : vector<8xf32>
    %11 = vector.multi_reduction <add>, %10, %cst_6 [1] : vector<8x20xf32> to vector<8xf32>
    %12 = vector.shape_cast %11 : vector<8xf32> to vector<8x1xf32>
    %cst_7 = arith.constant 5.000000e-02 : f32
    %13 = vector.broadcast %cst_7 : f32 to vector<8x1xf32>
    %14 = arith.mulf %12, %13 : vector<8x1xf32>
    %cst_8 = arith.constant 9.99999974E-6 : f32
    %15 = vector.broadcast %cst_8 : f32 to vector<8x1xf32>
    %16 = arith.addf %14, %15 : vector<8x1xf32>
    %17 = math.rsqrt %16 : vector<8x1xf32>
    %c0_9 = arith.constant 0 : index
    %c0_10 = arith.constant 0 : index
    %c0_11 = arith.constant 0 : index
    %18 = vector.load %arg3[%c0_9, %c0_10, %c0_11] : memref<3x8x1xf32, #tpu.memory_space<vmem>>, vector<1x8x1xf32>
    %19 = vector.shape_cast %18 : vector<1x8x1xf32> to vector<8x1xf32>
    %20 = arith.mulf %17, %19 : vector<8x1xf32>
    %21 = vector.broadcast %20 : vector<8x1xf32> to vector<8x20xf32>
    %22 = arith.mulf %9, %21 : vector<8x20xf32>
    %c0_12 = arith.constant 0 : index
    %c0_13 = arith.constant 0 : index
    %c0_14 = arith.constant 0 : index
    %23 = vector.load %arg4[%c0_12, %c0_13, %c0_14] : memref<3x8x1xf32, #tpu.memory_space<vmem>>, vector<1x8x1xf32>
    %24 = vector.shape_cast %23 : vector<1x8x1xf32> to vector<8x1xf32>
    %25 = vector.broadcast %24 : vector<8x1xf32> to vector<8x20xf32>
    %26 = arith.addf %22, %25 : vector<8x20xf32>
    %cst_15 = arith.constant 0.000000e+00 : f32
    %27 = vector.broadcast %cst_15 : f32 to vector<8x20xf32>
    %28 = arith.maximumf %26, %27 : vector<8x20xf32>
    %c0_16 = arith.constant 0 : index
    %c0_17 = arith.constant 0 : index
    %c0_18 = arith.constant 0 : index
    %29 = vector.load %arg5[%c0_16, %c0_17, %c0_18] : memref<3x8x20xf32, #tpu.memory_space<vmem>>, vector<1x8x20xf32>
    %30 = vector.shape_cast %29 : vector<1x8x20xf32> to vector<8x20xf32>
    %31 = vector.shape_cast %28 : vector<8x20xf32> to vector<1x8x20xf32>
    tpu.vector_store %arg5[%c0_16, %c0_17, %c0_18], %31 {strides = array<i32>} : memref<3x8x20xf32, #tpu.memory_space<vmem>>, vector<1x8x20xf32>,
    %c1 = arith.constant 1 : index
    %c0_19 = arith.constant 0 : index
    %c0_20 = arith.constant 0 : index
    %32 = vector.load %arg1[%c1, %c0_19, %c0_20] : memref<3x28x20xf32, #tpu.memory_space<vmem>>, vector<1x28x20xf32>
    %33 = vector.shape_cast %32 : vector<1x28x20xf32> to vector<28x20xf32>
    %cst_21 = arith.constant dense<0.000000e+00> : vector<8x20xf32>
    %34 = tpu.matmul %0, %33, %cst_21 {dimension_numbers = #tpu.dot_dimension_numbers<[1], [0], [0], [1], [0, 0, 1, 1], [], []>} : vector<8x28xf32>, vector<28x20xf32>, vector<8x20xf32> -> vector<8x20xf32>
    %cst_22 = arith.constant dense<0.000000e+00> : vector<8xf32>
    %35 = vector.multi_reduction <add>, %34, %cst_22 [1] : vector<8x20xf32> to vector<8xf32>
    %36 = vector.shape_cast %35 : vector<8xf32> to vector<8x1xf32>
    %cst_23 = arith.constant 5.000000e-02 : f32
    %37 = vector.broadcast %cst_23 : f32 to vector<8x1xf32>
    %38 = arith.mulf %36, %37 : vector<8x1xf32>
    %39 = vector.broadcast %38 : vector<8x1xf32> to vector<8x20xf32>
    %40 = arith.subf %34, %39 : vector<8x20xf32>
    %41 = arith.mulf %40, %40 : vector<8x20xf32>
    %cst_24 = arith.constant dense<0.000000e+00> : vector<8xf32>
    %42 = vector.multi_reduction <add>, %41, %cst_24 [1] : vector<8x20xf32> to vector<8xf32>
    %43 = vector.shape_cast %42 : vector<8xf32> to vector<8x1xf32>
    %cst_25 = arith.constant 5.000000e-02 : f32
    %44 = vector.broadcast %cst_25 : f32 to vector<8x1xf32>
    %45 = arith.mulf %43, %44 : vector<8x1xf32>
    %cst_26 = arith.constant 9.99999974E-6 : f32
    %46 = vector.broadcast %cst_26 : f32 to vector<8x1xf32>
    %47 = arith.addf %45, %46 : vector<8x1xf32>
    %48 = math.rsqrt %47 : vector<8x1xf32>
    %c1_27 = arith.constant 1 : index
    %c0_28 = arith.constant 0 : index
    %c0_29 = arith.constant 0 : index
    %49 = vector.load %arg3[%c1_27, %c0_28, %c0_29] : memref<3x8x1xf32, #tpu.memory_space<vmem>>, vector<1x8x1xf32>
    %50 = vector.shape_cast %49 : vector<1x8x1xf32> to vector<8x1xf32>
    %51 = arith.mulf %48, %50 : vector<8x1xf32>
    %52 = vector.broadcast %51 : vector<8x1xf32> to vector<8x20xf32>
    %53 = arith.mulf %40, %52 : vector<8x20xf32>
    %c1_30 = arith.constant 1 : index
    %c0_31 = arith.constant 0 : index
    %c0_32 = arith.constant 0 : index
    %54 = vector.load %arg4[%c1_30, %c0_31, %c0_32] : memref<3x8x1xf32, #tpu.memory_space<vmem>>, vector<1x8x1xf32>
    %55 = vector.shape_cast %54 : vector<1x8x1xf32> to vector<8x1xf32>
    %56 = vector.broadcast %55 : vector<8x1xf32> to vector<8x20xf32>
    %57 = arith.addf %53, %56 : vector<8x20xf32>
    %cst_33 = arith.constant 0.000000e+00 : f32
    %58 = vector.broadcast %cst_33 : f32 to vector<8x20xf32>
    %59 = arith.maximumf %57, %58 : vector<8x20xf32>
    %c1_34 = arith.constant 1 : index
    %c0_35 = arith.constant 0 : index
    %c0_36 = arith.constant 0 : index
    %60 = vector.load %arg5[%c1_34, %c0_35, %c0_36] : memref<3x8x20xf32, #tpu.memory_space<vmem>>, vector<1x8x20xf32>
    %61 = vector.shape_cast %60 : vector<1x8x20xf32> to vector<8x20xf32>
    %62 = vector.shape_cast %59 : vector<8x20xf32> to vector<1x8x20xf32>
    tpu.vector_store %arg5[%c1_34, %c0_35, %c0_36], %62 {strides = array<i32>} : memref<3x8x20xf32, #tpu.memory_space<vmem>>, vector<1x8x20xf32>,
    %c2 = arith.constant 2 : index
    %c0_37 = arith.constant 0 : index
    %c0_38 = arith.constant 0 : index
    %63 = vector.load %arg1[%c2, %c0_37, %c0_38] : memref<3x28x20xf32, #tpu.memory_space<vmem>>, vector<1x28x20xf32>
    %64 = vector.shape_cast %63 : vector<1x28x20xf32> to vector<28x20xf32>
    %cst_39 = arith.constant dense<0.000000e+00> : vector<8x20xf32>
    %65 = tpu.matmul %0, %64, %cst_39 {dimension_numbers = #tpu.dot_dimension_numbers<[1], [0], [0], [1], [0, 0, 1, 1], [], []>} : vector<8x28xf32>, vector<28x20xf32>, vector<8x20xf32> -> vector<8x20xf32>
    %cst_40 = arith.constant dense<0.000000e+00> : vector<8xf32>
    %66 = vector.multi_reduction <add>, %65, %cst_40 [1] : vector<8x20xf32> to vector<8xf32>
    %67 = vector.shape_cast %66 : vector<8xf32> to vector<8x1xf32>
    %cst_41 = arith.constant 5.000000e-02 : f32
    %68 = vector.broadcast %cst_41 : f32 to vector<8x1xf32>
    %69 = arith.mulf %67, %68 : vector<8x1xf32>
    %70 = vector.broadcast %69 : vector<8x1xf32> to vector<8x20xf32>
    %71 = arith.subf %65, %70 : vector<8x20xf32>
    %72 = arith.mulf %71, %71 : vector<8x20xf32>
    %cst_42 = arith.constant dense<0.000000e+00> : vector<8xf32>
    %73 = vector.multi_reduction <add>, %72, %cst_42 [1] : vector<8x20xf32> to vector<8xf32>
    %74 = vector.shape_cast %73 : vector<8xf32> to vector<8x1xf32>
    %cst_43 = arith.constant 5.000000e-02 : f32
    %75 = vector.broadcast %cst_43 : f32 to vector<8x1xf32>
    %76 = arith.mulf %74, %75 : vector<8x1xf32>
    %cst_44 = arith.constant 9.99999974E-6 : f32
    %77 = vector.broadcast %cst_44 : f32 to vector<8x1xf32>
    %78 = arith.addf %76, %77 : vector<8x1xf32>
    %79 = math.rsqrt %78 : vector<8x1xf32>
    %c2_45 = arith.constant 2 : index
    %c0_46 = arith.constant 0 : index
    %c0_47 = arith.constant 0 : index
    %80 = vector.load %arg3[%c2_45, %c0_46, %c0_47] : memref<3x8x1xf32, #tpu.memory_space<vmem>>, vector<1x8x1xf32>
    %81 = vector.shape_cast %80 : vector<1x8x1xf32> to vector<8x1xf32>
    %82 = arith.mulf %79, %81 : vector<8x1xf32>
    %83 = vector.broadcast %82 : vector<8x1xf32> to vector<8x20xf32>
    %84 = arith.mulf %71, %83 : vector<8x20xf32>
    %c2_48 = arith.constant 2 : index
    %c0_49 = arith.constant 0 : index
    %c0_50 = arith.constant 0 : index
    %85 = vector.load %arg4[%c2_48, %c0_49, %c0_50] : memref<3x8x1xf32, #tpu.memory_space<vmem>>, vector<1x8x1xf32>
    %86 = vector.shape_cast %85 : vector<1x8x1xf32> to vector<8x1xf32>
    %87 = vector.broadcast %86 : vector<8x1xf32> to vector<8x20xf32>
    %88 = arith.addf %84, %87 : vector<8x20xf32>
    %cst_51 = arith.constant 0.000000e+00 : f32
    %89 = vector.broadcast %cst_51 : f32 to vector<8x20xf32>
    %90 = arith.maximumf %88, %89 : vector<8x20xf32>
    %c2_52 = arith.constant 2 : index
    %c0_53 = arith.constant 0 : index
    %c0_54 = arith.constant 0 : index
    %91 = vector.load %arg5[%c2_52, %c0_53, %c0_54] : memref<3x8x20xf32, #tpu.memory_space<vmem>>, vector<1x8x20xf32>
    %92 = vector.shape_cast %91 : vector<1x8x20xf32> to vector<8x20xf32>
    %93 = vector.shape_cast %90 : vector<8x20xf32> to vector<1x8x20xf32>
    tpu.vector_store %arg5[%c2_52, %c0_53, %c0_54], %93 {strides = array<i32>} : memref<3x8x20xf32, #tpu.memory_space<vmem>>, vector<1x8x20xf32>,
    return
  }
  func.func @transform_0(%arg0: i32) -> (i32, i32, i32) {
    %c0_i32 = arith.constant 0 : i32
    %c0_i32_0 = arith.constant 0 : i32
    %c0_i32_1 = arith.constant 0 : i32
    %c0_i32_2 = arith.constant 0 : i32
    return %c0_i32, %c0_i32_0, %c0_i32_1 : i32, i32, i32
  }
  func.func @transform_1(%arg0: i32) -> (i32, i32) {
    %c0_i32 = arith.constant 0 : i32
    %c0_i32_0 = arith.constant 0 : i32
    %c0_i32_1 = arith.constant 0 : i32
    return %c0_i32, %c0_i32_0 : i32, i32
  }
  func.func @transform_2(%arg0: i32) -> (i32, i32, i32) {
    %c0_i32 = arith.constant 0 : i32
    %c0_i32_0 = arith.constant 0 : i32
    %c0_i32_1 = arith.constant 0 : i32
    %c0_i32_2 = arith.constant 0 : i32
    return %c0_i32, %c0_i32_0, %c0_i32_1 : i32, i32, i32
  }
  func.func @transform_3(%arg0: i32) -> (i32, i32, i32) {
    %c0_i32 = arith.constant 0 : i32
    %c0_i32_0 = arith.constant 0 : i32
    %c0_i32_1 = arith.constant 0 : i32
    %c0_i32_2 = arith.constant 0 : i32
    return %c0_i32, %c0_i32_0, %c0_i32_1 : i32, i32, i32
  }
  func.func @transform_4(%arg0: i32) -> (i32, i32, i32) {
    %c0_i32 = arith.constant 0 : i32
    %c0_i32_0 = arith.constant 0 : i32
    %c0_i32_1 = arith.constant 0 : i32
    %c0_i32_2 = arith.constant 0 : i32
    return %c0_i32, %c0_i32_0, %c0_i32_1 : i32, i32, i32
  }
}

</mosaic_0001>

<llo_original>
// kernel: temporal_block_forward.1
$region0: #{temporal_block_forward.1}
  #allocation0 [shape = 'u32[]', space=smem, size = 0x4, offset = 0x4, fixed_abs, tag = 'smem constant byte address 0x4 - core index']
  #allocation1 [shape = 'u32[144,128]{1,0:T(1,128)}', space=vmem, size = 0x12000, scoped, tag = 'internal scratch']
  %s0 = inlined_call_operand.vmem [shape: f32[3,28,20], index: 0, kind: input, shape index: {}]
  %s1 = inlined_call_operand.vmem [shape: f32[8,28], index: 1, kind: input, shape index: {}]
  %s2 = inlined_call_operand.vmem [shape: f32[3,8,1], index: 2, kind: input, shape index: {}]
  %s3 = inlined_call_operand.vmem [shape: f32[3,8,1], index: 3, kind: input, shape index: {}]
  %s4 = inlined_call_operand.vmem [shape: f32[3,8,20], index: 4, kind: output, shape index: {}]
  %s5 = sld [smem:[#allocation0]]
  $region26: #{temporal_block_forward.1} parent=0
    _
  %s7 = ssub.s32 1, %s5
  %s8 = scalar_select 0, %s7, %s5
  // Predicated region
  $region2: #{temporal_block_forward.1} parent=0 // pred_check
    _
  $region3: #{temporal_block_forward.1} parent=0 // pred_check_branch
    %10 = sbr.rel (0) target = $region5
  $region4: #{temporal_block_forward.1} parent=0 // pred_region
    _
  $region5: #{temporal_block_forward.1} parent=0 // pred_fallthru
    _
  // Predicated region
  $region6: #{temporal_block_forward.1} parent=0 // pred_check
    _
  $region7: #{temporal_block_forward.1} parent=0 // pred_check_branch
    %12 = sbr.rel (0) target = $region9
  $region8: #{temporal_block_forward.1} parent=0 // pred_region
    _
  $region9: #{temporal_block_forward.1} parent=0 // pred_fallthru
    _
  // Predicated region
  $region10: #{temporal_block_forward.1} parent=0 // pred_check
    _
  $region11: #{temporal_block_forward.1} parent=0 // pred_check_branch
    %14 = sbr.rel (0) target = $region13
  $region12: #{temporal_block_forward.1} parent=0 // pred_region
    _
  $region13: #{temporal_block_forward.1} parent=0 // pred_fallthru
    _
  // Predicated region
  $region14: #{temporal_block_forward.1} parent=0 // pred_check
    _
  $region15: #{temporal_block_forward.1} parent=0 // pred_check_branch
    %16 = sbr.rel (0) target = $region17
  $region16: #{temporal_block_forward.1} parent=0 // pred_region
    _
  $region17: #{temporal_block_forward.1} parent=0 // pred_fallthru
    _
  %v17 = vld [vmem:[%s1] sm:$0xff]
  %v18 = vld [vmem:[%s0] sm:$0xff]
  %v19 = vld [vmem:[%s0 + $0x8] sm:$0xff]
  %v20 = vld [vmem:[%s0 + $0x10] sm:$0xff]
  %v21 = vld [vmem:[%s0 + $0x18] sm:$0xf]
  %vm22 = vcmask 228352
  %v24 = vsel %vm22, %v17, 0
  %vm26 = vcmask 1043456
  %v28 = vsel %vm26, %v21, 0
  %30 = vmatprep.subr.mxu0 0.0
  %31 = vmatpush1.msra.mxu0 0.0
  %32 = vmatprep.subr.mxu0 0.0
  %33 = vmatpush1.msra.mxu0 0.0
  %34 = vmatprep.subr.mxu0 0.0
  %35 = vmatpush1.msra.mxu0 0.0
  %36 = vmatprep.subr.mxu0 0.0
  %37 = vmatpush1.msra.mxu0 0.0
  %38 = vmatprep.subr.mxu0 0.0
  %39 = vmatpush1.msra.mxu0 0.0
  %40 = vmatprep.subr.mxu0 0.0
  %41 = vmatpush1.msra.mxu0 0.0
  %42 = vmatprep.subr.mxu0 0.0
  %43 = vmatpush1.msra.mxu0 0.0
  %44 = vmatprep.subr.mxu0 0.0
  %45 = vmatpush1.msra.mxu0 0.0
  %46 = vmatprep.subr.mxu0 0.0
  %47 = vmatpush1.msra.mxu0 0.0
  %48 = vmatprep.subr.mxu0 0.0
  %49 = vmatpush1.msra.mxu0 0.0
  %50 = vmatprep.subr.mxu0 0.0
  %51 = vmatpush1.msra.mxu0 0.0
  %52 = vmatprep.subr.mxu0 0.0
  %53 = vmatpush1.msra.mxu0 0.0
  %54 = vmatprep.subr.mxu0 0.0
  %55 = vmatpush1.msra.mxu0 %v28
  %56 = vmatprep.subr.mxu0 0.0
  %57 = vmatpush1.msra.mxu0 %v20
  %58 = vmatprep.subr.mxu0 0.0
  %59 = vmatpush1.msra.mxu0 %v19
  %60 = vmatprep.subr.mxu0 0.0
  %61 = vmatpush1.msra.mxu0 %v18
  %62 = vmatprep.subr.mxu0 0.0
  %63 = vmatpush2.msra.mxu0 0.0
  %64 = vmatprep.subr.mxu0 0.0
  %65 = vmatpush2.msra.mxu0 0.0
  %66 = vmatprep.subr.mxu0 0.0
  %67 = vmatpush2.msra.mxu0 0.0
  %68 = vmatprep.subr.mxu0 0.0
  %69 = vmatpush2.msra.mxu0 0.0
  %70 = vmatprep.subr.mxu0 0.0
  %71 = vmatpush2.msra.mxu0 0.0
  %72 = vmatprep.subr.mxu0 0.0
  %73 = vmatpush2.msra.mxu0 0.0
  %74 = vmatprep.subr.mxu0 0.0
  %75 = vmatpush2.msra.mxu0 0.0
  %76 = vmatprep.subr.mxu0 0.0
  %77 = vmatpush2.msra.mxu0 0.0
  %78 = vmatprep.subr.mxu0 0.0
  %79 = vmatpush2.msra.mxu0 0.0
  %80 = vmatprep.subr.mxu0 0.0
  %81 = vmatpush2.msra.mxu0 0.0
  %82 = vmatprep.subr.mxu0 0.0
  %83 = vmatpush2.msra.mxu0 0.0
  %84 = vmatprep.subr.mxu0 0.0
  %85 = vmatpush2.msra.mxu0 0.0
  %86 = vmatprep.subr.mxu0 0.0
  %87 = vmatpush2.msra.mxu0 0.0
  %88 = vmatprep.subr.mxu0 0.0
  %89 = vmatpush2.msra.mxu0 0.0
  %90 = vmatprep.subr.mxu0 0.0
  %91 = vmatpush2.msra.mxu0 0.0
  %92 = vmatprep.subr.mxu0 0.0
  %93 = vmatpush2.msra.mxu0 0.0
  %94 = vmatprep.mubr.f32.mxu0 0.0
  %95 = vmatmul.mubr.f32.gmra.mxu0 %v24
  %v96 = vpop.f32.mrf.mxu0
  %v97 = vadd.f32 0.0, %v96
  %v98 = vpop.f32.mrf.mxu0
  %99 = vdwg.mxu0
  %vm100 = vcmask 162816
  %v101 = vsel %vm100, %v97, 0.0
  %102 = vadd.xlane.f32.xlu0 %v101
  %v103 = vpop.xlane.xlu0 %102
  %v104 = vmul.f32 %v103, 0.05
  %v105 = vsub.f32 %v97, %v104
  %v106 = vmul.f32 %v105, %v105
  %v107 = vsel %vm100, %v106, 0.0
  %108 = vadd.xlane.f32.xlu0 %v107
  %v109 = vpop.xlane.xlu0 %108
  %v110 = vmul.f32 %v109, 0.05
  %v111 = vadd.f32 %v110, 1e-05
  %v112 = vrsqrt.pop %v111
  %v113 = vld [vmem:[%s2] sm:$0xff]
  %v114 = vmul.f32 %v112, %v113
  %116 = vset.pattern.permute.xlu0 0
  %117 = vperm.xlu0 %116, %v114
  %v118 = vpop.permute.xlu0 %117
  %v120 = vmul.f32 %v105, %v118
  %v121 = vld [vmem:[%s3] sm:$0xff]
  %123 = vset.pattern.permute.xlu0 0
  %124 = vperm.xlu0 %123, %v121
  %v125 = vpop.permute.xlu0 %124
  %v127 = vadd.f32 %v120, %v125
  %v128 = vmax.f32 %v127, 0.0
  %129 = vst.msk [vmem:[%s4] sm:$0xff] %vm100, %v128
  %s130 = scalar_lea.vmem %s0, 32
  %v131 = vld [vmem:[%s130] sm:$0xff]
  %v132 = vld [vmem:[%s130 + $0x8] sm:$0xff]
  %v133 = vld [vmem:[%s130 + $0x10] sm:$0xff]
  %v134 = vld [vmem:[%s130 + $0x18] sm:$0xf]
  %v136 = vsel %vm26, %v134, 0
  %138 = vmatprep.subr.mxu0 0.0
  %139 = vmatpush1.msra.mxu0 0.0
  %140 = vmatprep.subr.mxu0 0.0
  %141 = vmatpush1.msra.mxu0 0.0
  %142 = vmatprep.subr.mxu0 0.0
  %143 = vmatpush1.msra.mxu0 0.0
  %144 = vmatprep.subr.mxu0 0.0
  %145 = vmatpush1.msra.mxu0 0.0
  %146 = vmatprep.subr.mxu0 0.0
  %147 = vmatpush1.msra.mxu0 0.0
  %148 = vmatprep.subr.mxu0 0.0
  %149 = vmatpush1.msra.mxu0 0.0
  %150 = vmatprep.subr.mxu0 0.0
  %151 = vmatpush1.msra.mxu0 0.0
  %152 = vmatprep.subr.mxu0 0.0
  %153 = vmatpush1.msra.mxu0 0.0
  %154 = vmatprep.subr.mxu0 0.0
  %155 = vmatpush1.msra.mxu0 0.0
  %156 = vmatprep.subr.mxu0 0.0
  %157 = vmatpush1.msra.mxu0 0.0
  %158 = vmatprep.subr.mxu0 0.0
  %159 = vmatpush1.msra.mxu0 0.0
  %160 = vmatprep.subr.mxu0 0.0
  %161 = vmatpush1.msra.mxu0 0.0
  %162 = vmatprep.subr.mxu0 0.0
  %163 = vmatpush1.msra.mxu0 %v136
  %164 = vmatprep.subr.mxu0 0.0
  %165 = vmatpush1.msra.mxu0 %v133
  %166 = vmatprep.subr.mxu0 0.0
  %167 = vmatpush1.msra.mxu0 %v132
  %168 = vmatprep.subr.mxu0 0.0
  %169 = vmatpush1.msra.mxu0 %v131
  %170 = vmatprep.subr.mxu0 0.0
  %171 = vmatpush2.msra.mxu0 0.0
  %172 = vmatprep.subr.mxu0 0.0
  %173 = vmatpush2.msra.mxu0 0.0
  %174 = vmatprep.subr.mxu0 0.0
  %175 = vmatpush2.msra.mxu0 0.0
  %176 = vmatprep.subr.mxu0 0.0
  %177 = vmatpush2.msra.mxu0 0.0
  %178 = vmatprep.subr.mxu0 0.0
  %179 = vmatpush2.msra.mxu0 0.0
  %180 = vmatprep.subr.mxu0 0.0
  %181 = vmatpush2.msra.mxu0 0.0
  %182 = vmatprep.subr.mxu0 0.0
  %183 = vmatpush2.msra.mxu0 0.0
  %184 = vmatprep.subr.mxu0 0.0
  %185 = vmatpush2.msra.mxu0 0.0
  %186 = vmatprep.subr.mxu0 0.0
  %187 = vmatpush2.msra.mxu0 0.0
  %188 = vmatprep.subr.mxu0 0.0
  %189 = vmatpush2.msra.mxu0 0.0
  %190 = vmatprep.subr.mxu0 0.0
  %191 = vmatpush2.msra.mxu0 0.0
  %192 = vmatprep.subr.mxu0 0.0
  %193 = vmatpush2.msra.mxu0 0.0
  %194 = vmatprep.subr.mxu0 0.0
  %195 = vmatpush2.msra.mxu0 0.0
  %196 = vmatprep.subr.mxu0 0.0
  %197 = vmatpush2.msra.mxu0 0.0
  %198 = vmatprep.subr.mxu0 0.0
  %199 = vmatpush2.msra.mxu0 0.0
  %200 = vmatprep.subr.mxu0 0.0
  %201 = vmatpush2.msra.mxu0 0.0
  %202 = vmatprep.mubr.f32.mxu0 0.0
  %203 = vmatmul.mubr.f32.gmra.mxu0 %v24
  %v204 = vpop.f32.mrf.mxu0
  %v205 = vadd.f32 0.0, %v204
  %v206 = vpop.f32.mrf.mxu0
  %207 = vdwg.mxu0
  %v208 = vsel %vm100, %v205, 0.0
  %209 = vadd.xlane.f32.xlu0 %v208
  %v210 = vpop.xlane.xlu0 %209
  %v211 = vmul.f32 %v210, 0.05
  %v212 = vsub.f32 %v205, %v211
  %v213 = vmul.f32 %v212, %v212
  %v214 = vsel %vm100, %v213, 0.0
  %215 = vadd.xlane.f32.xlu0 %v214
  %v216 = vpop.xlane.xlu0 %215
  %v217 = vmul.f32 %v216, 0.05
  %v218 = vadd.f32 %v217, 1e-05
  %v219 = vrsqrt.pop %v218
  %s220 = scalar_lea.vmem %s2, 8
  %v221 = vld [vmem:[%s220] sm:$0xff]
  %v222 = vmul.f32 %v219, %v221
  %224 = vset.pattern.permute.xlu0 0
  %225 = vperm.xlu0 %224, %v222
  %v226 = vpop.permute.xlu0 %225
  %v228 = vmul.f32 %v212, %v226
  %s229 = scalar_lea.vmem %s3, 8
  %v230 = vld [vmem:[%s229] sm:$0xff]
  %232 = vset.pattern.permute.xlu0 0
  %233 = vperm.xlu0 %232, %v230
  %v234 = vpop.permute.xlu0 %233
  %v236 = vadd.f32 %v228, %v234
  %v237 = vmax.f32 %v236, 0.0
  %s238 = scalar_lea.vmem %s4, 8
  %239 = vst.msk [vmem:[%s238] sm:$0xff] %vm100, %v237
  %s240 = scalar_lea.vmem %s0, 64
  %v241 = vld [vmem:[%s240] sm:$0xff]
  %v242 = vld [vmem:[%s240 + $0x8] sm:$0xff]
  %v243 = vld [vmem:[%s240 + $0x10] sm:$0xff]
  %v244 = vld [vmem:[%s240 + $0x18] sm:$0xf]
  %v246 = vsel %vm26, %v244, 0
  %248 = vmatprep.subr.mxu0 0.0
  %249 = vmatpush1.msra.mxu0 0.0
  %250 = vmatprep.subr.mxu0 0.0
  %251 = vmatpush1.msra.mxu0 0.0
  %252 = vmatprep.subr.mxu0 0.0
  %253 = vmatpush1.msra.mxu0 0.0
  %254 = vmatprep.subr.mxu0 0.0
  %255 = vmatpush1.msra.mxu0 0.0
  %256 = vmatprep.subr.mxu0 0.0
  %257 = vmatpush1.msra.mxu0 0.0
  %258 = vmatprep.subr.mxu0 0.0
  %259 = vmatpush1.msra.mxu0 0.0
  %260 = vmatprep.subr.mxu0 0.0
  %261 = vmatpush1.msra.mxu0 0.0
  %262 = vmatprep.subr.mxu0 0.0
  %263 = vmatpush1.msra.mxu0 0.0
  %264 = vmatprep.subr.mxu0 0.0
  %265 = vmatpush1.msra.mxu0 0.0
  %266 = vmatprep.subr.mxu0 0.0
  %267 = vmatpush1.msra.mxu0 0.0
  %268 = vmatprep.subr.mxu0 0.0
  %269 = vmatpush1.msra.mxu0 0.0
  %270 = vmatprep.subr.mxu0 0.0
  %271 = vmatpush1.msra.mxu0 0.0
  %272 = vmatprep.subr.mxu0 0.0
  %273 = vmatpush1.msra.mxu0 %v246
  %274 = vmatprep.subr.mxu0 0.0
  %275 = vmatpush1.msra.mxu0 %v243
  %276 = vmatprep.subr.mxu0 0.0
  %277 = vmatpush1.msra.mxu0 %v242
  %278 = vmatprep.subr.mxu0 0.0
  %279 = vmatpush1.msra.mxu0 %v241
  %280 = vmatprep.subr.mxu0 0.0
  %281 = vmatpush2.msra.mxu0 0.0
  %282 = vmatprep.subr.mxu0 0.0
  %283 = vmatpush2.msra.mxu0 0.0
  %284 = vmatprep.subr.mxu0 0.0
  %285 = vmatpush2.msra.mxu0 0.0
  %286 = vmatprep.subr.mxu0 0.0
  %287 = vmatpush2.msra.mxu0 0.0
  %288 = vmatprep.subr.mxu0 0.0
  %289 = vmatpush2.msra.mxu0 0.0
  %290 = vmatprep.subr.mxu0 0.0
  %291 = vmatpush2.msra.mxu0 0.0
  %292 = vmatprep.subr.mxu0 0.0
  %293 = vmatpush2.msra.mxu0 0.0
  %294 = vmatprep.subr.mxu0 0.0
  %295 = vmatpush2.msra.mxu0 0.0
  %296 = vmatprep.subr.mxu0 0.0
  %297 = vmatpush2.msra.mxu0 0.0
  %298 = vmatprep.subr.mxu0 0.0
  %299 = vmatpush2.msra.mxu0 0.0
  %300 = vmatprep.subr.mxu0 0.0
  %301 = vmatpush2.msra.mxu0 0.0
  %302 = vmatprep.subr.mxu0 0.0
  %303 = vmatpush2.msra.mxu0 0.0
  %304 = vmatprep.subr.mxu0 0.0
  %305 = vmatpush2.msra.mxu0 0.0
  %306 = vmatprep.subr.mxu0 0.0
  %307 = vmatpush2.msra.mxu0 0.0
  %308 = vmatprep.subr.mxu0 0.0
  %309 = vmatpush2.msra.mxu0 0.0
  %310 = vmatprep.subr.mxu0 0.0
  %311 = vmatpush2.msra.mxu0 0.0
  %312 = vmatprep.mubr.f32.mxu0 0.0
  %313 = vmatmul.mubr.f32.gmra.mxu0 %v24
  %v314 = vpop.f32.mrf.mxu0
  %v315 = vadd.f32 0.0, %v314
  %v316 = vpop.f32.mrf.mxu0
  %317 = vdwg.mxu0
  %v318 = vsel %vm100, %v315, 0.0
  %319 = vadd.xlane.f32.xlu0 %v318
  %v320 = vpop.xlane.xlu0 %319
  %v321 = vmul.f32 %v320, 0.05
  %v322 = vsub.f32 %v315, %v321
  %v323 = vmul.f32 %v322, %v322
  %v324 = vsel %vm100, %v323, 0.0
  %325 = vadd.xlane.f32.xlu0 %v324
  %v326 = vpop.xlane.xlu0 %325
  %v327 = vmul.f32 %v326, 0.05
  %v328 = vadd.f32 %v327, 1e-05
  %v329 = vrsqrt.pop %v328
  %s330 = scalar_lea.vmem %s2, 16
  %v331 = vld [vmem:[%s330] sm:$0xff]
  %v332 = vmul.f32 %v329, %v331
  %334 = vset.pattern.permute.xlu0 0
  %335 = vperm.xlu0 %334, %v332
  %v336 = vpop.permute.xlu0 %335
  %v338 = vmul.f32 %v322, %v336
  %s339 = scalar_lea.vmem %s3, 16
  %v340 = vld [vmem:[%s339] sm:$0xff]
  %342 = vset.pattern.permute.xlu0 0
  %343 = vperm.xlu0 %342, %v340
  %v344 = vpop.permute.xlu0 %343
  %v346 = vadd.f32 %v338, %v344
  %v347 = vmax.f32 %v346, 0.0
  %s348 = scalar_lea.vmem %s4, 16
  %349 = vst.msk [vmem:[%s348] sm:$0xff] %vm100, %v347
  // Predicated region
  $region18: #{temporal_block_forward.1} parent=0 // pred_check
    _
  $region19: #{temporal_block_forward.1} parent=0 // pred_check_branch
    %351 = sbr.rel (0) target = $region21
  $region20: #{temporal_block_forward.1} parent=0 // pred_region
    _
  $region21: #{temporal_block_forward.1} parent=0 // pred_fallthru
    _
  // Predicated region
  $region22: #{temporal_block_forward.1} parent=0 // pred_check
    _
  $region23: #{temporal_block_forward.1} parent=0 // pred_check_branch
    %353 = sbr.rel (0) target = $region25
  $region24: #{temporal_block_forward.1} parent=0 // pred_region
    _
  $region25: #{temporal_block_forward.1} parent=0 // pred_fallthru
    _

</llo_original>
